<compile_context>
chip_gen: v7x
topology: tpu7x:2x2x1
jax: 0.10.0
libtpu: 0.0.40
codegen_flags: <defaults>
</compile_context>

<pallas_src>
import jax
import jax.numpy as jnp
from jax.experimental import pallas as pl
from jax.experimental.pallas import tpu as pltpu
from functools import partial

HIDDEN_LAYERS = [256, 128, 32]
LANE = 128
DEFAULT_BLOCK_BATCH = 2048


def _round_up(v, m):
    return (v + m - 1) // m * m


def mlp_kernel(out_size, x_ref, w1_ref, b1_ref, w2_ref, b2_ref,
               w3_ref, b3_ref, w4_ref, b4_ref, o_ref):
    """Fused MLP on one batch tile.

    Matmul operands are in the weights' dtype (bf16 on the fast path, cast
    done here in VMEM — no wrapper-side HBM cast pass); accumulation, bias
    adds and ReLU are f32. Only the first `out_size` columns are stored.
    """
    cdt = w1_ref.dtype
    h = jnp.dot(x_ref[...].astype(cdt), w1_ref[...],
                preferred_element_type=jnp.float32)
    h = jnp.maximum(h + b1_ref[...], 0.0)

    h = jnp.dot(h.astype(cdt), w2_ref[...], preferred_element_type=jnp.float32)
    h = jnp.maximum(h + b2_ref[...], 0.0)

    h = jnp.dot(h.astype(cdt), w3_ref[...], preferred_element_type=jnp.float32)
    h = jnp.maximum(h + b3_ref[...], 0.0)

    h = jnp.dot(h.astype(cdt), w4_ref[...], preferred_element_type=jnp.float32)
    h = h + b4_ref[...]
    # Store only the real output columns; the lane padding never reaches HBM.
    o_ref[...] = h[:, :out_size].astype(o_ref.dtype)


def _prepare_params(params, compute_dtype):
    """Zero-pad each layer's output width (and the next layer's input rows)
    to a multiple of 128 lanes. Exact for Linear+ReLU. Weights are cast to
    the matmul compute dtype; biases stay f32 (added to the f32 accumulator).
    """
    n_layers = len(params) // 2
    padded = []
    prev_out_pad = None
    for i in range(n_layers):
        w, b = params[2 * i], params[2 * i + 1]
        fan_in, fan_out = w.shape
        in_pad = fan_in if prev_out_pad is None else prev_out_pad
        out_pad = _round_up(fan_out, LANE)
        w_p = jnp.zeros((in_pad, out_pad), jnp.float32).at[:fan_in, :fan_out].set(w)
        b_p = jnp.zeros((1, out_pad), jnp.float32).at[:, :fan_out].set(b)
        padded.extend([w_p.astype(compute_dtype), b_p])
        prev_out_pad = out_pad
    return padded


@partial(jax.jit, static_argnames=("block_batch", "use_bf16"))
def mlp_forward(x, params, *, block_batch=DEFAULT_BLOCK_BATCH, use_bf16=True):
    """params = [w1, b1, w2, b2, w3, b3, w4, b4], w_i: (in_i, out_i), b_i: (1, out_i)."""
    batch, in_size = x.shape
    out_size = params[-1].shape[-1]
    compute_dtype = jnp.bfloat16 if use_bf16 else jnp.float32

    padded_params = _prepare_params(params, compute_dtype)

    # Batch tile: sublane-aligned, capped at block_batch, and chosen so large
    # batches produce >= 2 grid steps (lets v7x megacore use both TCs).
    # Ragged last block is handled by Pallas boundary masking — no jnp.pad.
    tb = max(8, min(block_batch, _round_up(pl.cdiv(batch, 2), 8)))
    grid = (pl.cdiv(batch, tb),)

    x_spec = pl.BlockSpec((tb, in_size), lambda i: (i, 0))
    # Constant index_map -> weights/biases DMA'd once and kept VMEM-resident.
    param_specs = [pl.BlockSpec(p.shape, lambda i: (0, 0)) for p in padded_params]
    out_spec = pl.BlockSpec((tb, out_size), lambda i: (i, 0))

    # Scoped-VMEM budget: double-buffered x/out tiles + resident params +
    # per-tile activations (f32 + bf16 copies), with 2x headroom, clamped to
    # 48 MiB (safe under v7x's 64 MiB VMEM; overrides v5e's 16 MiB default).
    param_bytes = sum(p.size * p.dtype.itemsize for p in padded_params)
    act_width = sum(w.shape[-1] for w in padded_params[0::2])
    est = (2 * tb * in_size * 4 + 2 * tb * out_size * 4
           + param_bytes + tb * act_width * 4 * 2)
    vmem_limit = int(min(max(2 * est, 16 << 20), 48 << 20))

    out = pl.pallas_call(
        partial(mlp_kernel, out_size),
        out_shape=jax.ShapeDtypeStruct((batch, out_size), jnp.float32),
        grid=grid,
        in_specs=[x_spec] + param_specs,
        out_specs=out_spec,
        compiler_params=pltpu.CompilerParams(
            dimension_semantics=("parallel",),
            vmem_limit_bytes=vmem_limit,
        ),
    )(x, *padded_params)
    return out


def init_params(key, input_size, hidden_layers, output_size):
    """Deterministic init mimicking nn.Linear default: U(-1/sqrt(fan_in), +1/sqrt(fan_in))."""
    layer_sizes = [input_size] + list(hidden_layers) + [output_size]
    params = []
    for i in range(len(layer_sizes) - 1):
        fan_in, fan_out = layer_sizes[i], layer_sizes[i + 1]
        key, kw, kb = jax.random.split(key, 3)
        bound = 1.0 / (fan_in ** 0.5)
        # stored directly as (in, out) — PyTorch weight (out, in) transposed
        w = jax.random.uniform(kw, (fan_in, fan_out), jnp.float32, -bound, bound)
        b = jax.random.uniform(kb, (1, fan_out), jnp.float32, -bound, bound)
        params.extend([w, b])
    return params


def reference_forward(x, params):
    """Pure-JAX f32 reference matching the PyTorch forward."""
    h = x
    n_layers = len(params) // 2
    for i in range(n_layers):
        w, b = params[2 * i], params[2 * i + 1]
        h = h @ w + b
        if i < n_layers - 1:
            h = jnp.maximum(h, 0.0)
    return h


if __name__ == "__main__":
    key = jax.random.PRNGKey(0)

    batch = 8
    input_size = 64      # stands in for features.shape[1]
    output_size = 8

    key, kx, kp = jax.random.split(key, 3)
    x = jax.random.normal(kx, (batch, input_size), jnp.float32)
    params = init_params(kp, input_size, HIDDEN_LAYERS, output_size)

    ref = reference_forward(x, params)

    # Exact path (f32 matmul operands) — validates lane padding + narrow store.
    out_f32 = jax.block_until_ready(mlp_forward(x, params, use_bf16=False))
    assert out_f32.shape == (batch, output_size)
    assert jnp.allclose(out_f32, ref, atol=1e-4, rtol=1e-4), "f32 path mismatch vs reference"

    # Fast path (bf16 matmul operands, f32 accumulation) — default.
    out_bf16 = jax.block_until_ready(mlp_forward(x, params))
    assert out_bf16.shape == (batch, output_size)
    assert jnp.allclose(out_bf16, ref, atol=5e-2, rtol=5e-2), "bf16 path mismatch vs reference"

    # Ragged batch (batch % tile != 0) — validates Pallas boundary masking
    # with no wrapper-side pad pass.
    batch_r = 70
    key, kxr = jax.random.split(key)
    x_r = jax.random.normal(kxr, (batch_r, input_size), jnp.float32)
    ref_r = reference_forward(x_r, params)
    out_r = jax.block_until_ready(mlp_forward(x_r, params, use_bf16=False))
    assert out_r.shape == (batch_r, output_size)
    assert jnp.allclose(out_r, ref_r, atol=1e-4, rtol=1e-4), "ragged-batch mismatch vs reference"

    print("KERNEL_OK")
</pallas_src>

<mosaic_0001>
module attributes {stable_mosaic.version = 11 : i64} {
  func.func @mlp_kernel(%arg0: i32, %arg1: memref<8x64xf32, #tpu.memory_space<vmem>>, %arg2: memref<64x256xf32, #tpu.memory_space<vmem>>, %arg3: memref<1x256xf32, #tpu.memory_space<vmem>>, %arg4: memref<256x128xf32, #tpu.memory_space<vmem>>, %arg5: memref<1x128xf32, #tpu.memory_space<vmem>>, %arg6: memref<128x128xf32, #tpu.memory_space<vmem>>, %arg7: memref<1x128xf32, #tpu.memory_space<vmem>>, %arg8: memref<128x128xf32, #tpu.memory_space<vmem>>, %arg9: memref<1x128xf32, #tpu.memory_space<vmem>>, %arg10: memref<8x8xf32, #tpu.memory_space<vmem>>) attributes {dimension_semantics = [#tpu.dimension_semantics<parallel>], iteration_bounds = array<i64: 1>, scalar_prefetch = 0 : i64, scratch_operands = 0 : i64, tpu.core_type = #tpu.core_type<tc>, window_params = [{transform_indices = @transform_0, window_bounds = array<i64: 8, 64>}, {pipeline_mode = #tpu.pipeline_mode<synchronous>, transform_indices = @transform_1, window_bounds = array<i64: 64, 256>}, {pipeline_mode = #tpu.pipeline_mode<synchronous>, transform_indices = @transform_2, window_bounds = array<i64: 1, 256>}, {pipeline_mode = #tpu.pipeline_mode<synchronous>, transform_indices = @transform_3, window_bounds = array<i64: 256, 128>}, {pipeline_mode = #tpu.pipeline_mode<synchronous>, transform_indices = @transform_4, window_bounds = array<i64: 1, 128>}, {pipeline_mode = #tpu.pipeline_mode<synchronous>, transform_indices = @transform_5, window_bounds = array<i64: 128, 128>}, {pipeline_mode = #tpu.pipeline_mode<synchronous>, transform_indices = @transform_6, window_bounds = array<i64: 1, 128>}, {pipeline_mode = #tpu.pipeline_mode<synchronous>, transform_indices = @transform_7, window_bounds = array<i64: 128, 128>}, {pipeline_mode = #tpu.pipeline_mode<synchronous>, transform_indices = @transform_8, window_bounds = array<i64: 1, 128>}, {transform_indices = @transform_9, window_bounds = array<i64: 8, 8>}]} {
    %c0 = arith.constant 0 : index
    %c0_0 = arith.constant 0 : index
    %0 = vector.load %arg1[%c0, %c0_0] : memref<8x64xf32, #tpu.memory_space<vmem>>, vector<8x64xf32>
    %c0_1 = arith.constant 0 : index
    %c0_2 = arith.constant 0 : index
    %1 = vector.load %arg2[%c0_1, %c0_2] : memref<64x256xf32, #tpu.memory_space<vmem>>, vector<64x256xf32>
    %cst = arith.constant dense<0.000000e+00> : vector<8x256xf32>
    %2 = tpu.matmul %0, %1, %cst {dimension_numbers = #tpu.dot_dimension_numbers<[1], [0], [0], [1], [0, 0, 1, 1], [], []>} : vector<8x64xf32>, vector<64x256xf32>, vector<8x256xf32> -> vector<8x256xf32>
    %c0_3 = arith.constant 0 : index
    %c0_4 = arith.constant 0 : index
    %3 = vector.load %arg3[%c0_3, %c0_4] : memref<1x256xf32, #tpu.memory_space<vmem>>, vector<1x256xf32>
    %4 = vector.broadcast %3 : vector<1x256xf32> to vector<8x256xf32>
    %5 = arith.addf %2, %4 : vector<8x256xf32>
    %cst_5 = arith.constant 0.000000e+00 : f32
    %6 = vector.broadcast %cst_5 : f32 to vector<8x256xf32>
    %7 = arith.maximumf %5, %6 : vector<8x256xf32>
    %c0_6 = arith.constant 0 : index
    %c0_7 = arith.constant 0 : index
    %8 = vector.load %arg4[%c0_6, %c0_7] : memref<256x128xf32, #tpu.memory_space<vmem>>, vector<256x128xf32>
    %cst_8 = arith.constant dense<0.000000e+00> : vector<8x128xf32>
    %9 = tpu.matmul %7, %8, %cst_8 {dimension_numbers = #tpu.dot_dimension_numbers<[1], [0], [0], [1], [0, 0, 1, 1], [], []>} : vector<8x256xf32>, vector<256x128xf32>, vector<8x128xf32> -> vector<8x128xf32>
    %c0_9 = arith.constant 0 : index
    %c0_10 = arith.constant 0 : index
    %10 = vector.load %arg5[%c0_9, %c0_10] : memref<1x128xf32, #tpu.memory_space<vmem>>, vector<1x128xf32>
    %11 = vector.broadcast %10 : vector<1x128xf32> to vector<8x128xf32>
    %12 = arith.addf %9, %11 : vector<8x128xf32>
    %cst_11 = arith.constant 0.000000e+00 : f32
    %13 = vector.broadcast %cst_11 : f32 to vector<8x128xf32>
    %14 = arith.maximumf %12, %13 : vector<8x128xf32>
    %c0_12 = arith.constant 0 : index
    %c0_13 = arith.constant 0 : index
    %15 = vector.load %arg6[%c0_12, %c0_13] : memref<128x128xf32, #tpu.memory_space<vmem>>, vector<128x128xf32>
    %cst_14 = arith.constant dense<0.000000e+00> : vector<8x128xf32>
    %16 = tpu.matmul %14, %15, %cst_14 {dimension_numbers = #tpu.dot_dimension_numbers<[1], [0], [0], [1], [0, 0, 1, 1], [], []>} : vector<8x128xf32>, vector<128x128xf32>, vector<8x128xf32> -> vector<8x128xf32>
    %c0_15 = arith.constant 0 : index
    %c0_16 = arith.constant 0 : index
    %17 = vector.load %arg7[%c0_15, %c0_16] : memref<1x128xf32, #tpu.memory_space<vmem>>, vector<1x128xf32>
    %18 = vector.broadcast %17 : vector<1x128xf32> to vector<8x128xf32>
    %19 = arith.addf %16, %18 : vector<8x128xf32>
    %cst_17 = arith.constant 0.000000e+00 : f32
    %20 = vector.broadcast %cst_17 : f32 to vector<8x128xf32>
    %21 = arith.maximumf %19, %20 : vector<8x128xf32>
    %c0_18 = arith.constant 0 : index
    %c0_19 = arith.constant 0 : index
    %22 = vector.load %arg8[%c0_18, %c0_19] : memref<128x128xf32, #tpu.memory_space<vmem>>, vector<128x128xf32>
    %cst_20 = arith.constant dense<0.000000e+00> : vector<8x128xf32>
    %23 = tpu.matmul %21, %22, %cst_20 {dimension_numbers = #tpu.dot_dimension_numbers<[1], [0], [0], [1], [0, 0, 1, 1], [], []>} : vector<8x128xf32>, vector<128x128xf32>, vector<8x128xf32> -> vector<8x128xf32>
    %c0_21 = arith.constant 0 : index
    %c0_22 = arith.constant 0 : index
    %24 = vector.load %arg9[%c0_21, %c0_22] : memref<1x128xf32, #tpu.memory_space<vmem>>, vector<1x128xf32>
    %25 = vector.broadcast %24 : vector<1x128xf32> to vector<8x128xf32>
    %26 = arith.addf %23, %25 : vector<8x128xf32>
    %27 = vector.extract_strided_slice %26 {offsets = [0, 0], sizes = [8, 8], strides = [1, 1]} : vector<8x128xf32> to vector<8x8xf32>
    %c0_23 = arith.constant 0 : index
    %c0_24 = arith.constant 0 : index
    %28 = vector.load %arg10[%c0_23, %c0_24] : memref<8x8xf32, #tpu.memory_space<vmem>>, vector<8x8xf32>
    tpu.vector_store %arg10[%c0_23, %c0_24], %27 {strides = array<i32>} : memref<8x8xf32, #tpu.memory_space<vmem>>, vector<8x8xf32>,
    return
  }
  func.func @transform_0(%arg0: i32) -> (i32, i32) {
    %c0_i32 = arith.constant 0 : i32
    %c0_i32_0 = arith.constant 0 : i32
    return %arg0, %c0_i32 : i32, i32
  }
  func.func @transform_1(%arg0: i32) -> (i32, i32) {
    %c0_i32 = arith.constant 0 : i32
    %c0_i32_0 = arith.constant 0 : i32
    %c0_i32_1 = arith.constant 0 : i32
    return %c0_i32, %c0_i32_0 : i32, i32
  }
  func.func @transform_2(%arg0: i32) -> (i32, i32) {
    %c0_i32 = arith.constant 0 : i32
    %c0_i32_0 = arith.constant 0 : i32
    %c0_i32_1 = arith.constant 0 : i32
    return %c0_i32, %c0_i32_0 : i32, i32
  }
  func.func @transform_3(%arg0: i32) -> (i32, i32) {
    %c0_i32 = arith.constant 0 : i32
    %c0_i32_0 = arith.constant 0 : i32
    %c0_i32_1 = arith.constant 0 : i32
    return %c0_i32, %c0_i32_0 : i32, i32
  }
  func.func @transform_4(%arg0: i32) -> (i32, i32) {
    %c0_i32 = arith.constant 0 : i32
    %c0_i32_0 = arith.constant 0 : i32
    %c0_i32_1 = arith.constant 0 : i32
    return %c0_i32, %c0_i32_0 : i32, i32
  }
  func.func @transform_5(%arg0: i32) -> (i32, i32) {
    %c0_i32 = arith.constant 0 : i32
    %c0_i32_0 = arith.constant 0 : i32
    %c0_i32_1 = arith.constant 0 : i32
    return %c0_i32, %c0_i32_0 : i32, i32
  }
  func.func @transform_6(%arg0: i32) -> (i32, i32) {
    %c0_i32 = arith.constant 0 : i32
    %c0_i32_0 = arith.constant 0 : i32
    %c0_i32_1 = arith.constant 0 : i32
    return %c0_i32, %c0_i32_0 : i32, i32
  }
  func.func @transform_7(%arg0: i32) -> (i32, i32) {
    %c0_i32 = arith.constant 0 : i32
    %c0_i32_0 = arith.constant 0 : i32
    %c0_i32_1 = arith.constant 0 : i32
    return %c0_i32, %c0_i32_0 : i32, i32
  }
  func.func @transform_8(%arg0: i32) -> (i32, i32) {
    %c0_i32 = arith.constant 0 : i32
    %c0_i32_0 = arith.constant 0 : i32
    %c0_i32_1 = arith.constant 0 : i32
    return %c0_i32, %c0_i32_0 : i32, i32
  }
  func.func @transform_9(%arg0: i32) -> (i32, i32) {
    %c0_i32 = arith.constant 0 : i32
    %c0_i32_0 = arith.constant 0 : i32
    return %arg0, %c0_i32 : i32, i32
  }
}

</mosaic_0001>

<llo_original>
// kernel: mlp_forward.1
$region0: #{mlp_forward.1}
  #allocation0 [shape = 'u32[]', space=smem, size = 0x4, offset = 0x4, fixed_abs, tag = 'smem constant byte address 0x4 - core index']
  #allocation1 [shape = 'u32[144,128]{1,0:T(1,128)}', space=vmem, size = 0x12000, scoped, tag = 'internal scratch']
  %s0 = inlined_call_operand.vmem [shape: f32[8,64], index: 0, kind: input, shape index: {}]
  %s1 = inlined_call_operand.vmem [shape: f32[64,256], index: 1, kind: input, shape index: {}]
  %s2 = inlined_call_operand.vmem [shape: f32[1,256], index: 2, kind: input, shape index: {}]
  %s3 = inlined_call_operand.vmem [shape: f32[256,128], index: 3, kind: input, shape index: {}]
  %s4 = inlined_call_operand.vmem [shape: f32[1,128], index: 4, kind: input, shape index: {}]
  %s5 = inlined_call_operand.vmem [shape: f32[128,128], index: 5, kind: input, shape index: {}]
  %s6 = inlined_call_operand.vmem [shape: f32[1,128], index: 6, kind: input, shape index: {}]
  %s7 = inlined_call_operand.vmem [shape: f32[128,128], index: 7, kind: input, shape index: {}]
  %s8 = inlined_call_operand.vmem [shape: f32[1,128], index: 8, kind: input, shape index: {}]
  %s9 = inlined_call_operand.hbm [shape: f32[8,8], index: 9, kind: output, shape index: {}]
  %s10 = sld [smem:[#allocation0]]
  $region46: #{mlp_forward.1} parent=0
    _
  %s12 = ssub.s32 1, %s10
  %s13 = scalar_select 0, %s12, %s10
  $region1: #{mlp_forward.1} parent=0
    #allocation2 [shape = 'u8[4096]{0}', space=vmem, size = 0x1000, scoped, tag = 'output window, operand 0, single buffered']
    #allocation3 [shape = 's32[1]{0}', space=sflag, size = 0x4, scoped, tag = 'scoped memory for mlp_forward.1']
    %14 = vsyncpa [#allocation3], 0
    // Predicated region
    $region2: #{mlp_forward.1} parent=1 // pred_check
      _
    $region3: #{mlp_forward.1} parent=1 // pred_check_branch
      %16 = sbr.rel (0) target = $region5
    $region4: #{mlp_forward.1} parent=1 // pred_region
      _
    $region5: #{mlp_forward.1} parent=1 // pred_fallthru
      _
    // Predicated region
    $region6: #{mlp_forward.1} parent=1 // pred_check
      _
    $region7: #{mlp_forward.1} parent=1 // pred_check_branch
      %18 = sbr.rel (0) target = $region9
    $region8: #{mlp_forward.1} parent=1 // pred_region
      _
    $region9: #{mlp_forward.1} parent=1 // pred_fallthru
      _
    // Predicated region
    $region10: #{mlp_forward.1} parent=1 // pred_check
      _
    $region11: #{mlp_forward.1} parent=1 // pred_check_branch
      %20 = sbr.rel (0) target = $region13
    $region12: #{mlp_forward.1} parent=1 // pred_region
      _
    $region13: #{mlp_forward.1} parent=1 // pred_fallthru
      _
    // Predicated region
    $region14: #{mlp_forward.1} parent=1 // pred_check
      _
    $region15: #{mlp_forward.1} parent=1 // pred_check_branch
      %22 = sbr.rel (0) target = $region17
    $region16: #{mlp_forward.1} parent=1 // pred_region
      _
    $region17: #{mlp_forward.1} parent=1 // pred_fallthru
      _
    // Predicated region
    $region18: #{mlp_forward.1} parent=1 // pred_check
      _
    $region19: #{mlp_forward.1} parent=1 // pred_check_branch
      %24 = sbr.rel (0) target = $region21
    $region20: #{mlp_forward.1} parent=1 // pred_region
      _
    $region21: #{mlp_forward.1} parent=1 // pred_fallthru
      _
    // Predicated region
    $region22: #{mlp_forward.1} parent=1 // pred_check
      _
    $region23: #{mlp_forward.1} parent=1 // pred_check_branch
      %26 = sbr.rel (0) target = $region25
    $region24: #{mlp_forward.1} parent=1 // pred_region
      _
    $region25: #{mlp_forward.1} parent=1 // pred_fallthru
      _
    // Predicated region
    $region26: #{mlp_forward.1} parent=1 // pred_check
      _
    $region27: #{mlp_forward.1} parent=1 // pred_check_branch
      %28 = sbr.rel (0) target = $region29
    $region28: #{mlp_forward.1} parent=1 // pred_region
      _
    $region29: #{mlp_forward.1} parent=1 // pred_fallthru
      _
    // Predicated region
    $region30: #{mlp_forward.1} parent=1 // pred_check
      _
    $region31: #{mlp_forward.1} parent=1 // pred_check_branch
      %30 = sbr.rel (0) target = $region33
    $region32: #{mlp_forward.1} parent=1 // pred_region
      _
    $region33: #{mlp_forward.1} parent=1 // pred_fallthru
      _
    // Predicated region
    $region34: #{mlp_forward.1} parent=1 // pred_check
      _
    $region35: #{mlp_forward.1} parent=1 // pred_check_branch
      %32 = sbr.rel (0) target = $region37
    $region36: #{mlp_forward.1} parent=1 // pred_region
      _
    $region37: #{mlp_forward.1} parent=1 // pred_fallthru
      _
    %v33 = vld [vmem:[%s0] sm:$0xff]
    %v34 = vld [vmem:[%s1] sm:$0xff]
    %v35 = vld [vmem:[%s1 + $0x8] sm:$0xff]
    %v36 = vld [vmem:[%s1 + $0x10] sm:$0xff]
    %v37 = vld [vmem:[%s1 + $0x18] sm:$0xff]
    %v38 = vld [vmem:[%s1 + $0x20] sm:$0xff]
    %v39 = vld [vmem:[%s1 + $0x28] sm:$0xff]
    %v40 = vld [vmem:[%s1 + $0x30] sm:$0xff]
    %v41 = vld [vmem:[%s1 + $0x38] sm:$0xff]
    %v42 = vld [vmem:[%s1 + $0x40] sm:$0xff]
    %v43 = vld [vmem:[%s1 + $0x48] sm:$0xff]
    %v44 = vld [vmem:[%s1 + $0x50] sm:$0xff]
    %v45 = vld [vmem:[%s1 + $0x58] sm:$0xff]
    %v46 = vld [vmem:[%s1 + $0x60] sm:$0xff]
    %v47 = vld [vmem:[%s1 + $0x68] sm:$0xff]
    %v48 = vld [vmem:[%s1 + $0x70] sm:$0xff]
    %v49 = vld [vmem:[%s1 + $0x78] sm:$0xff]
    %v50 = vld [vmem:[%s2] sm:$0x3]
    %v52 = vlaneseq
    %v53 = vshrl.u32 %v52, 7
    %v54 = vsub.s32 0, %v53
    %v55 = vrot.slane %v50, %v54
    %v56 = vlaneseq
    %v57 = vshrl.u32 %v56, 7
    %v58 = vsub.s32 1, %v57
    %v59 = vrot.slane %v50, %v58
    %vm62 = vcmask 523264
    %v64 = vsel %vm62, %v33, 0
    %66 = vmatprep.subr.mxu0 %v35
    %67 = vmatpush1.msra.mxu0 %v34
    %68 = vmatprep.subr.mxu0 %v37
    %69 = vmatpush1.msra.mxu0 %v36
    %70 = vmatprep.subr.mxu0 %v39
    %71 = vmatpush1.msra.mxu0 %v38
    %72 = vmatprep.subr.mxu0 %v41
    %73 = vmatpush1.msra.mxu0 %v40
    %74 = vmatprep.subr.mxu0 %v43
    %75 = vmatpush1.msra.mxu0 %v42
    %76 = vmatprep.subr.mxu0 %v45
    %77 = vmatpush1.msra.mxu0 %v44
    %78 = vmatprep.subr.mxu0 %v47
    %79 = vmatpush1.msra.mxu0 %v46
    %80 = vmatprep.subr.mxu0 %v49
    %81 = vmatpush1.msra.mxu0 %v48
    %82 = vmatprep.subr.mxu0 0.0
    %83 = vmatpush1.msra.mxu0 0.0
    %84 = vmatprep.subr.mxu0 0.0
    %85 = vmatpush1.msra.mxu0 0.0
    %86 = vmatprep.subr.mxu0 0.0
    %87 = vmatpush1.msra.mxu0 0.0
    %88 = vmatprep.subr.mxu0 0.0
    %89 = vmatpush1.msra.mxu0 0.0
    %90 = vmatprep.subr.mxu0 0.0
    %91 = vmatpush1.msra.mxu0 0.0
    %92 = vmatprep.subr.mxu0 0.0
    %93 = vmatpush1.msra.mxu0 0.0
    %94 = vmatprep.subr.mxu0 0.0
    %95 = vmatpush1.msra.mxu0 0.0
    %96 = vmatprep.subr.mxu0 0.0
    %97 = vmatpush1.msra.mxu0 0.0
    %98 = vmatprep.subr.mxu0 0.0
    %99 = vmatpush1.msra.mxu0 0.0
    %100 = vmatprep.subr.mxu0 0.0
    %101 = vmatpush1.msra.mxu0 0.0
    %102 = vmatprep.subr.mxu0 0.0
    %103 = vmatpush1.msra.mxu0 0.0
    %104 = vmatprep.subr.mxu0 0.0
    %105 = vmatpush1.msra.mxu0 0.0
    %106 = vmatprep.subr.mxu0 0.0
    %107 = vmatpush1.msra.mxu0 0.0
    %108 = vmatprep.subr.mxu0 0.0
    %109 = vmatpush1.msra.mxu0 0.0
    %110 = vmatprep.subr.mxu0 0.0
    %111 = vmatpush1.msra.mxu0 0.0
    %112 = vmatprep.subr.mxu0 0.0
    %113 = vmatpush1.msra.mxu0 0.0
    %114 = vmatprep.subr.mxu0 0.0
    %115 = vmatpush1.msra.mxu0 0.0
    %116 = vmatprep.subr.mxu0 0.0
    %117 = vmatpush1.msra.mxu0 0.0
    %118 = vmatprep.subr.mxu0 0.0
    %119 = vmatpush1.msra.mxu0 0.0
    %120 = vmatprep.subr.mxu0 0.0
    %121 = vmatpush1.msra.mxu0 0.0
    %122 = vmatprep.subr.mxu0 0.0
    %123 = vmatpush1.msra.mxu0 0.0
    %124 = vmatprep.subr.mxu0 0.0
    %125 = vmatpush1.msra.mxu0 0.0
    %126 = vmatprep.subr.mxu0 0.0
    %127 = vmatpush1.msra.mxu0 0.0
    %128 = vmatprep.subr.mxu0 0.0
    %129 = vmatpush1.msra.mxu0 0.0
    %130 = vmatprep.mubr.f32.mxu0 0.0
    %131 = vmatmul.mubr.f32.gmra.mrb[0].mxu0 %v64
    %v132 = vpop.f32.mrb[0].mxu0
    %v133 = vadd.f32 %v55, %v132
    %v134 = vpop.f32.mrb[0].mxu0
    %v135 = vadd.f32 %v59, %v134
    %136 = vdwg.mxu0
    %v137 = vmax.f32 %v133, 0.0
    %v138 = vmax.f32 %v135, 0.0
    %v139 = vld [vmem:[%s3] sm:$0xff]
    %v140 = vld [vmem:[%s3 + $0x8] sm:$0xff]
    %v141 = vld [vmem:[%s3 + $0x10] sm:$0xff]
    %v142 = vld [vmem:[%s3 + $0x18] sm:$0xff]
    %v143 = vld [vmem:[%s3 + $0x20] sm:$0xff]
    %v144 = vld [vmem:[%s3 + $0x28] sm:$0xff]
    %v145 = vld [vmem:[%s3 + $0x30] sm:$0xff]
    %v146 = vld [vmem:[%s3 + $0x38] sm:$0xff]
    %v147 = vld [vmem:[%s3 + $0x40] sm:$0xff]
    %v148 = vld [vmem:[%s3 + $0x48] sm:$0xff]
    %v149 = vld [vmem:[%s3 + $0x50] sm:$0xff]
    %v150 = vld [vmem:[%s3 + $0x58] sm:$0xff]
    %v151 = vld [vmem:[%s3 + $0x60] sm:$0xff]
    %v152 = vld [vmem:[%s3 + $0x68] sm:$0xff]
    %v153 = vld [vmem:[%s3 + $0x70] sm:$0xff]
    %v154 = vld [vmem:[%s3 + $0x78] sm:$0xff]
    %v155 = vld [vmem:[%s3 + $0x80] sm:$0xff]
    %v156 = vld [vmem:[%s3 + $0x88] sm:$0xff]
    %v157 = vld [vmem:[%s3 + $0x90] sm:$0xff]
    %v158 = vld [vmem:[%s3 + $0x98] sm:$0xff]
    %v159 = vld [vmem:[%s3 + $0xa0] sm:$0xff]
    %v160 = vld [vmem:[%s3 + $0xa8] sm:$0xff]
    %v161 = vld [vmem:[%s3 + $0xb0] sm:$0xff]
    %v162 = vld [vmem:[%s3 + $0xb8] sm:$0xff]
    %v163 = vld [vmem:[%s3 + $0xc0] sm:$0xff]
    %v164 = vld [vmem:[%s3 + $0xc8] sm:$0xff]
    %v165 = vld [vmem:[%s3 + $0xd0] sm:$0xff]
    %v166 = vld [vmem:[%s3 + $0xd8] sm:$0xff]
    %v167 = vld [vmem:[%s3 + $0xe0] sm:$0xff]
    %v168 = vld [vmem:[%s3 + $0xe8] sm:$0xff]
    %v169 = vld [vmem:[%s3 + $0xf0] sm:$0xff]
    %v170 = vld [vmem:[%s3 + $0xf8] sm:$0xff]
    %v171 = vld [vmem:[%s4] sm:$0x1]
    %v173 = vlaneseq
    %v174 = vshrl.u32 %v173, 7
    %v175 = vsub.s32 0, %v174
    %v176 = vrot.slane %v171, %v175
    %178 = vmatprep.subr.mxu0 0.0
    %179 = vmatpush1.msra.mxu0 %v139
    %180 = vmatprep.subr.mxu0 0.0
    %181 = vmatpush1.msra.mxu0 %v140
    %182 = vmatprep.subr.mxu0 0.0
    %183 = vmatpush1.msra.mxu0 %v141
    %184 = vmatprep.subr.mxu0 0.0
    %185 = vmatpush1.msra.mxu0 %v142
    %186 = vmatprep.subr.mxu0 0.0
    %187 = vmatpush1.msra.mxu0 %v143
    %188 = vmatprep.subr.mxu0 0.0
    %189 = vmatpush1.msra.mxu0 %v144
    %190 = vmatprep.subr.mxu0 0.0
    %191 = vmatpush1.msra.mxu0 %v145
    %192 = vmatprep.subr.mxu0 0.0
    %193 = vmatpush1.msra.mxu0 %v146
    %194 = vmatprep.subr.mxu0 0.0
    %195 = vmatpush1.msra.mxu0 %v147
    %196 = vmatprep.subr.mxu0 0.0
    %197 = vmatpush1.msra.mxu0 %v148
    %198 = vmatprep.subr.mxu0 0.0
    %199 = vmatpush1.msra.mxu0 %v149
    %200 = vmatprep.subr.mxu0 0.0
    %201 = vmatpush1.msra.mxu0 %v150
    %202 = vmatprep.subr.mxu0 0.0
    %203 = vmatpush1.msra.mxu0 %v151
    %204 = vmatprep.subr.mxu0 0.0
    %205 = vmatpush1.msra.mxu0 %v152
    %206 = vmatprep.subr.mxu0 0.0
    %207 = vmatpush1.msra.mxu0 %v153
    %208 = vmatprep.subr.mxu0 0.0
    %209 = vmatpush1.msra.mxu0 %v154
    %210 = vmatprep.subr.mxu0 0.0
    %211 = vmatpush1.msra.mxu0 %v155
    %212 = vmatprep.subr.mxu0 0.0
    %213 = vmatpush1.msra.mxu0 %v156
    %214 = vmatprep.subr.mxu0 0.0
    %215 = vmatpush1.msra.mxu0 %v157
    %216 = vmatprep.subr.mxu0 0.0
    %217 = vmatpush1.msra.mxu0 %v158
    %218 = vmatprep.subr.mxu0 0.0
    %219 = vmatpush1.msra.mxu0 %v159
    %220 = vmatprep.subr.mxu0 0.0
    %221 = vmatpush1.msra.mxu0 %v160
    %222 = vmatprep.subr.mxu0 0.0
    %223 = vmatpush1.msra.mxu0 %v161
    %224 = vmatprep.subr.mxu0 0.0
    %225 = vmatpush1.msra.mxu0 %v162
    %226 = vmatprep.subr.mxu0 0.0
    %227 = vmatpush1.msra.mxu0 %v163
    %228 = vmatprep.subr.mxu0 0.0
    %229 = vmatpush1.msra.mxu0 %v164
    %230 = vmatprep.subr.mxu0 0.0
    %231 = vmatpush1.msra.mxu0 %v165
    %232 = vmatprep.subr.mxu0 0.0
    %233 = vmatpush1.msra.mxu0 %v166
    %234 = vmatprep.subr.mxu0 0.0
    %235 = vmatpush1.msra.mxu0 %v167
    %236 = vmatprep.subr.mxu0 0.0
    %237 = vmatpush1.msra.mxu0 %v168
    %238 = vmatprep.subr.mxu0 0.0
    %239 = vmatpush1.msra.mxu0 %v169
    %240 = vmatprep.subr.mxu0 0.0
    %241 = vmatpush1.msra.mxu0 %v170
    %242 = vmatprep.mubr.f32.mxu0 %v138
    %243 = vmatmul.mubr.f32.gmra.mrb[0].mxu0 %v137
    %v244 = vpop.f32.mrb[0].mxu0
    %v245 = vadd.f32 %v176, %v244
    %v246 = vpop.f32.mrb[0].mxu0
    %247 = vdwg.mxu0
    %v248 = vmax.f32 %v245, 0.0
    %v249 = vld [vmem:[%s5] sm:$0xff]
    %v250 = vld [vmem:[%s5 + $0x8] sm:$0xff]
    %v251 = vld [vmem:[%s5 + $0x10] sm:$0xff]
    %v252 = vld [vmem:[%s5 + $0x18] sm:$0xff]
    %v253 = vld [vmem:[%s5 + $0x20] sm:$0xff]
    %v254 = vld [vmem:[%s5 + $0x28] sm:$0xff]
    %v255 = vld [vmem:[%s5 + $0x30] sm:$0xff]
    %v256 = vld [vmem:[%s5 + $0x38] sm:$0xff]
    %v257 = vld [vmem:[%s5 + $0x40] sm:$0xff]
    %v258 = vld [vmem:[%s5 + $0x48] sm:$0xff]
    %v259 = vld [vmem:[%s5 + $0x50] sm:$0xff]
    %v260 = vld [vmem:[%s5 + $0x58] sm:$0xff]
    %v261 = vld [vmem:[%s5 + $0x60] sm:$0xff]
    %v262 = vld [vmem:[%s5 + $0x68] sm:$0xff]
    %v263 = vld [vmem:[%s5 + $0x70] sm:$0xff]
    %v264 = vld [vmem:[%s5 + $0x78] sm:$0xff]
    %v265 = vld [vmem:[%s6] sm:$0x1]
    %v267 = vlaneseq
    %v268 = vshrl.u32 %v267, 7
    %v269 = vsub.s32 0, %v268
    %v270 = vrot.slane %v265, %v269
    %272 = vmatprep.subr.mxu0 0.0
    %273 = vmatpush1.msra.mxu0 %v249
    %274 = vmatprep.subr.mxu0 0.0
    %275 = vmatpush1.msra.mxu0 %v250
    %276 = vmatprep.subr.mxu0 0.0
    %277 = vmatpush1.msra.mxu0 %v251
    %278 = vmatprep.subr.mxu0 0.0
    %279 = vmatpush1.msra.mxu0 %v252
    %280 = vmatprep.subr.mxu0 0.0
    %281 = vmatpush1.msra.mxu0 %v253
    %282 = vmatprep.subr.mxu0 0.0
    %283 = vmatpush1.msra.mxu0 %v254
    %284 = vmatprep.subr.mxu0 0.0
    %285 = vmatpush1.msra.mxu0 %v255
    %286 = vmatprep.subr.mxu0 0.0
    %287 = vmatpush1.msra.mxu0 %v256
    %288 = vmatprep.subr.mxu0 0.0
    %289 = vmatpush1.msra.mxu0 %v257
    %290 = vmatprep.subr.mxu0 0.0
    %291 = vmatpush1.msra.mxu0 %v258
    %292 = vmatprep.subr.mxu0 0.0
    %293 = vmatpush1.msra.mxu0 %v259
    %294 = vmatprep.subr.mxu0 0.0
    %295 = vmatpush1.msra.mxu0 %v260
    %296 = vmatprep.subr.mxu0 0.0
    %297 = vmatpush1.msra.mxu0 %v261
    %298 = vmatprep.subr.mxu0 0.0
    %299 = vmatpush1.msra.mxu0 %v262
    %300 = vmatprep.subr.mxu0 0.0
    %301 = vmatpush1.msra.mxu0 %v263
    %302 = vmatprep.subr.mxu0 0.0
    %303 = vmatpush1.msra.mxu0 %v264
    %304 = vmatprep.subr.mxu0 0.0
    %305 = vmatpush1.msra.mxu0 0.0
    %306 = vmatprep.subr.mxu0 0.0
    %307 = vmatpush1.msra.mxu0 0.0
    %308 = vmatprep.subr.mxu0 0.0
    %309 = vmatpush1.msra.mxu0 0.0
    %310 = vmatprep.subr.mxu0 0.0
    %311 = vmatpush1.msra.mxu0 0.0
    %312 = vmatprep.subr.mxu0 0.0
    %313 = vmatpush1.msra.mxu0 0.0
    %314 = vmatprep.subr.mxu0 0.0
    %315 = vmatpush1.msra.mxu0 0.0
    %316 = vmatprep.subr.mxu0 0.0
    %317 = vmatpush1.msra.mxu0 0.0
    %318 = vmatprep.subr.mxu0 0.0
    %319 = vmatpush1.msra.mxu0 0.0
    %320 = vmatprep.subr.mxu0 0.0
    %321 = vmatpush1.msra.mxu0 0.0
    %322 = vmatprep.subr.mxu0 0.0
    %323 = vmatpush1.msra.mxu0 0.0
    %324 = vmatprep.subr.mxu0 0.0
    %325 = vmatpush1.msra.mxu0 0.0
    %326 = vmatprep.subr.mxu0 0.0
    %327 = vmatpush1.msra.mxu0 0.0
    %328 = vmatprep.subr.mxu0 0.0
    %329 = vmatpush1.msra.mxu0 0.0
    %330 = vmatprep.subr.mxu0 0.0
    %331 = vmatpush1.msra.mxu0 0.0
    %332 = vmatprep.subr.mxu0 0.0
    %333 = vmatpush1.msra.mxu0 0.0
    %334 = vmatprep.subr.mxu0 0.0
    %335 = vmatpush1.msra.mxu0 0.0
    %336 = vmatprep.mubr.f32.mxu0 0.0
    %337 = vmatmul.mubr.f32.gmra.mrb[0].mxu0 %v248
    %v338 = vpop.f32.mrb[0].mxu0
    %v339 = vadd.f32 %v270, %v338
    %v340 = vpop.f32.mrb[0].mxu0
    %341 = vdwg.mxu0
    %v342 = vmax.f32 %v339, 0.0
    %v343 = vld [vmem:[%s7] sm:$0xff]
    %v344 = vld [vmem:[%s7 + $0x8] sm:$0xff]
    %v345 = vld [vmem:[%s7 + $0x10] sm:$0xff]
    %v346 = vld [vmem:[%s7 + $0x18] sm:$0xff]
    %v347 = vld [vmem:[%s7 + $0x20] sm:$0xff]
    %v348 = vld [vmem:[%s7 + $0x28] sm:$0xff]
    %v349 = vld [vmem:[%s7 + $0x30] sm:$0xff]
    %v350 = vld [vmem:[%s7 + $0x38] sm:$0xff]
    %v351 = vld [vmem:[%s7 + $0x40] sm:$0xff]
    %v352 = vld [vmem:[%s7 + $0x48] sm:$0xff]
    %v353 = vld [vmem:[%s7 + $0x50] sm:$0xff]
    %v354 = vld [vmem:[%s7 + $0x58] sm:$0xff]
    %v355 = vld [vmem:[%s7 + $0x60] sm:$0xff]
    %v356 = vld [vmem:[%s7 + $0x68] sm:$0xff]
    %v357 = vld [vmem:[%s7 + $0x70] sm:$0xff]
    %v358 = vld [vmem:[%s7 + $0x78] sm:$0xff]
    %v359 = vld [vmem:[%s8] sm:$0x1]
    %v361 = vlaneseq
    %v362 = vshrl.u32 %v361, 7
    %v363 = vsub.s32 0, %v362
    %v364 = vrot.slane %v359, %v363
    %366 = vmatprep.subr.mxu0 0.0
    %367 = vmatpush1.msra.mxu0 %v343
    %368 = vmatprep.subr.mxu0 0.0
    %369 = vmatpush1.msra.mxu0 %v344
    %370 = vmatprep.subr.mxu0 0.0
    %371 = vmatpush1.msra.mxu0 %v345
    %372 = vmatprep.subr.mxu0 0.0
    %373 = vmatpush1.msra.mxu0 %v346
    %374 = vmatprep.subr.mxu0 0.0
    %375 = vmatpush1.msra.mxu0 %v347
    %376 = vmatprep.subr.mxu0 0.0
    %377 = vmatpush1.msra.mxu0 %v348
    %378 = vmatprep.subr.mxu0 0.0
    %379 = vmatpush1.msra.mxu0 %v349
    %380 = vmatprep.subr.mxu0 0.0
    %381 = vmatpush1.msra.mxu0 %v350
    %382 = vmatprep.subr.mxu0 0.0
    %383 = vmatpush1.msra.mxu0 %v351
    %384 = vmatprep.subr.mxu0 0.0
    %385 = vmatpush1.msra.mxu0 %v352
    %386 = vmatprep.subr.mxu0 0.0
    %387 = vmatpush1.msra.mxu0 %v353
    %388 = vmatprep.subr.mxu0 0.0
    %389 = vmatpush1.msra.mxu0 %v354
    %390 = vmatprep.subr.mxu0 0.0
    %391 = vmatpush1.msra.mxu0 %v355
    %392 = vmatprep.subr.mxu0 0.0
    %393 = vmatpush1.msra.mxu0 %v356
    %394 = vmatprep.subr.mxu0 0.0
    %395 = vmatpush1.msra.mxu0 %v357
    %396 = vmatprep.subr.mxu0 0.0
    %397 = vmatpush1.msra.mxu0 %v358
    %398 = vmatprep.subr.mxu0 0.0
    %399 = vmatpush1.msra.mxu0 0.0
    %400 = vmatprep.subr.mxu0 0.0
    %401 = vmatpush1.msra.mxu0 0.0
    %402 = vmatprep.subr.mxu0 0.0
    %403 = vmatpush1.msra.mxu0 0.0
    %404 = vmatprep.subr.mxu0 0.0
    %405 = vmatpush1.msra.mxu0 0.0
    %406 = vmatprep.subr.mxu0 0.0
    %407 = vmatpush1.msra.mxu0 0.0
    %408 = vmatprep.subr.mxu0 0.0
    %409 = vmatpush1.msra.mxu0 0.0
    %410 = vmatprep.subr.mxu0 0.0
    %411 = vmatpush1.msra.mxu0 0.0
    %412 = vmatprep.subr.mxu0 0.0
    %413 = vmatpush1.msra.mxu0 0.0
    %414 = vmatprep.subr.mxu0 0.0
    %415 = vmatpush1.msra.mxu0 0.0
    %416 = vmatprep.subr.mxu0 0.0
    %417 = vmatpush1.msra.mxu0 0.0
    %418 = vmatprep.subr.mxu0 0.0
    %419 = vmatpush1.msra.mxu0 0.0
    %420 = vmatprep.subr.mxu0 0.0
    %421 = vmatpush1.msra.mxu0 0.0
    %422 = vmatprep.subr.mxu0 0.0
    %423 = vmatpush1.msra.mxu0 0.0
    %424 = vmatprep.subr.mxu0 0.0
    %425 = vmatpush1.msra.mxu0 0.0
    %426 = vmatprep.subr.mxu0 0.0
    %427 = vmatpush1.msra.mxu0 0.0
    %428 = vmatprep.subr.mxu0 0.0
    %429 = vmatpush1.msra.mxu0 0.0
    %430 = vmatprep.mubr.f32.mxu0 0.0
    %431 = vmatmul.mubr.f32.gmra.mrb[0].mxu0 %v342
    %v432 = vpop.f32.mrb[0].mxu0
    %v433 = vadd.f32 %v364, %v432
    %v434 = vpop.f32.mrb[0].mxu0
    %435 = vdwg.mxu0
    %vm436 = vcmask 64512
    %437 = vst.msk [vmem:[#allocation2] sm:$0xff] %vm436, %v433
    // Predicated region
    $region38: #{mlp_forward.1} parent=1 // pred_check
      _
    $region39: #{mlp_forward.1} parent=1 // pred_check_branch
      %439 = sbr.rel (0) target = $region41
    $region40: #{mlp_forward.1} parent=1 // pred_region
      %s441 = ssub.s32 128, 128
      %442 = vsyncadd [#allocation3], %s441
      %s444 = sshll.u32 [#allocation2], 4
      %s445 = int_to_ptr.vmem [resolvable:$true] %s444
      %447 = dma.vmem_to_hbm [thread:$0]  %s445, 128, %s9, [#allocation3]
    $region41: #{mlp_forward.1} parent=1 // pred_fallthru
      _
    // Predicated region
    $region42: #{mlp_forward.1} parent=1 // pred_check
      _
    $region43: #{mlp_forward.1} parent=1 // pred_check_branch
      %449 = sbr.rel (0) target = $region45
    $region44: #{mlp_forward.1} parent=1 // pred_region
      %450 = dma.done [#allocation3], 128
    $region45: #{mlp_forward.1} parent=1 // pred_fallthru
      _
    %451 = vsyncpa [#allocation3], 1

</llo_original>
